<compile_context>
chip_gen: v7x
topology: tpu7x:2x2x1
jax: 0.10.0
libtpu: 0.0.40
codegen_flags: <defaults>
</compile_context>

<pallas_src>
import functools
import math

import jax
import jax.numpy as jnp
from jax import lax
from jax.experimental import pallas as pl
from jax.experimental.pallas import tpu as pltpu


def _round_up(x, m):
    return ((x + m - 1) // m) * m


def _glove_tile_kernel(in_ref, out_ref, aux_ref, sums_ref, *, x_max, alpha):
    """One (TB, Dpad) tile of batch rows -> accumulate 5 partial sums.

    in_ref  : (TB, Dpad) gathered input embeddings (zero padded)
    out_ref : (TB, Dpad) gathered output embeddings (zero padded)
    aux_ref : (TB, 128)  lane 0 = in_bias+out_bias, lane 1 = co_oc(+1), lane 2 = valid
    sums_ref: (1, 8, 128) per-chunk accumulator; lanes 0..4 of every sublane hold
              Sw, Swr, Swr2, Sc, Sc2.
    """
    ti = pl.program_id(1)

    @pl.when(ti == 0)
    def _init():
        sums_ref[...] = jnp.zeros_like(sums_ref)

    a = in_ref[...]                                   # (TB, Dpad)
    b = out_ref[...]                                  # (TB, Dpad)
    aux = aux_ref[...]                                # (TB, 128)

    # Per-row dot products; zero padding on D makes the unmasked reduce exact.
    s = jnp.sum(a * b, axis=-1, keepdims=True)        # (TB, 1)

    c = aux[:, 0:1]                                   # in_bias[i] + out_bias[i]
    co = aux[:, 1:2]                                  # co_oc[ii, oi] + 1  (>= 1)
    valid = aux[:, 2:3]                               # 1.0 real row / 0.0 padding

    log_co = jnp.log(co)                              # padded rows: log(1) = 0
    r = s - log_co
    # (co / x_max) ** alpha routed through EUP exp/log; clamp to 1 above x_max.
    w = jnp.where(co <= x_max,
                  jnp.exp(alpha * (log_co - math.log(x_max))),
                  jnp.ones_like(co))
    w = w * valid                                     # padded rows contribute 0

    # Per-tile reductions (5 sublane reduces per TB rows).
    sw = jnp.sum(w)
    swr = jnp.sum(w * r)
    swr2 = jnp.sum(w * r * r)
    sc = jnp.sum(c)
    sc2 = jnp.sum(c * c)

    # Lane-pack the 5 scalars ONCE per tile and accumulate.
    lane = lax.broadcasted_iota(jnp.int32, sums_ref.shape, 2)   # (1, 8, 128)
    packed = (jnp.where(lane == 0, sw, 0.0)
              + jnp.where(lane == 1, swr, 0.0)
              + jnp.where(lane == 2, swr2, 0.0)
              + jnp.where(lane == 3, sc, 0.0)
              + jnp.where(lane == 4, sc2, 0.0))
    sums_ref[...] += packed


def glove_loss(input_idx, output_idx, in_emb, out_emb, in_bias, out_bias, co_oc,
               x_max=100.0, alpha=0.75, tile_rows=128, num_chunks=1):
    """GloVe loss matching the PyTorch module's forward (co_oc is the RAW count
    matrix; the +1.0 from the module's __init__ is applied here).

    num_chunks: leave at 1 on v5e/v6e; set 2 on v7x so the 'parallel' chunk
    axis can split tiles across the two TensorCores.
    """
    B = int(input_idx.shape[0])
    V, D = in_emb.shape

    ii = input_idx.astype(jnp.int32)
    oi = output_idx.astype(jnp.int32)
    # Note: XLA gathers clamp out-of-range indices instead of erroring like torch.

    # Wrapper-side gathers (O(B*D) bytes total, done once by XLA).
    in_e = in_emb[ii].astype(jnp.float32)                         # (B, D)
    out_e = out_emb[oi].astype(jnp.float32)                       # (B, D)
    c = (in_bias[ii] + out_bias[oi]).astype(jnp.float32).reshape(B)   # (B,)
    co = co_oc.astype(jnp.float32)[ii, oi] + 1.0                  # (B,), module's +1

    # Lane / sublane aligned padding.
    Dpad = _round_up(max(D, 1), 128)
    TB = min(_round_up(max(int(tile_rows), 8), 8), _round_up(B, 8))
    Bpad = _round_up(B, TB)
    nt = Bpad // TB
    nc = num_chunks if (num_chunks > 0 and nt % num_chunks == 0) else 1
    tiles_per_chunk = nt // nc

    in_e = jnp.pad(in_e, ((0, Bpad - B), (0, Dpad - D)))          # zeros
    out_e = jnp.pad(out_e, ((0, Bpad - B), (0, Dpad - D)))        # zeros

    aux = jnp.zeros((Bpad, 128), jnp.float32)
    aux = aux.at[:, 1].set(1.0)        # padded rows: co = 1 -> log 0, finite
    aux = aux.at[:B, 0].set(c)
    aux = aux.at[:B, 1].set(co)
    aux = aux.at[:B, 2].set(1.0)       # validity mask

    kernel = functools.partial(_glove_tile_kernel,
                               x_max=float(x_max), alpha=float(alpha))

    sums = pl.pallas_call(
        kernel,
        out_shape=jax.ShapeDtypeStruct((nc, 8, 128), jnp.float32),
        grid=(nc, tiles_per_chunk),
        in_specs=[
            pl.BlockSpec((TB, Dpad), lambda ci, ti: (ci * tiles_per_chunk + ti, 0)),
            pl.BlockSpec((TB, Dpad), lambda ci, ti: (ci * tiles_per_chunk + ti, 0)),
            pl.BlockSpec((TB, 128), lambda ci, ti: (ci * tiles_per_chunk + ti, 0)),
        ],
        out_specs=pl.BlockSpec((1, 8, 128), lambda ci, ti: (ci, 0, 0)),
        compiler_params=pltpu.CompilerParams(
            dimension_semantics=("parallel", "arbitrary")),
    )(in_e, out_e, aux)

    # Combine per-chunk partial sums (all 8 sublanes are identical; use row 0).
    tot = jnp.sum(sums[:, 0, :], axis=0)
    sw, swr, swr2, sc, sc2 = tot[0], tot[1], tot[2], tot[3], tot[4]
    # loss = mean_{i,j} w_j * (c_i + r_j)^2  (the torch (B,B) broadcast, collapsed)
    return (sw * sc2 + 2.0 * swr * sc + B * swr2) / float(B * B)


if __name__ == "__main__":
    V, D, B = 16, 32, 8          # num_classes, emb_dim, batch_size
    X_MAX, ALPHA = 100.0, 0.75

    key = jax.random.PRNGKey(0)
    k1, k2, k3, k4, k5, k6, k7 = jax.random.split(key, 7)

    def xavier_uniform(k, shape):
        bound = (6.0 / (shape[0] + shape[1])) ** 0.5
        return jax.random.uniform(k, shape, jnp.float32, -bound, bound)

    in_emb = xavier_uniform(k1, (V, D))
    out_emb = xavier_uniform(k2, (V, D))
    in_bias = xavier_uniform(k3, (V, 1))
    out_bias = xavier_uniform(k4, (V, 1))

    # Raw (non-negative) synthetic co-occurrence counts; the module adds +1.0.
    co_oc = jax.random.uniform(k5, (V, V), jnp.float32, 0.0, 300.0)

    input_idx = jax.random.randint(k6, (B,), 0, V, dtype=jnp.int32)
    output_idx = jax.random.randint(k7, (B,), 0, V, dtype=jnp.int32)

    loss = glove_loss(input_idx, output_idx, in_emb, out_emb, in_bias, out_bias,
                      co_oc, x_max=X_MAX, alpha=ALPHA)
    loss = jax.block_until_ready(loss)

    # Pure-JAX reference reproducing the PyTorch broadcasting semantics exactly.
    co_p1 = co_oc + 1.0
    in_e = in_emb[input_idx]
    out_e = out_emb[output_idx]
    in_b = in_bias[input_idx]            # (B, 1)
    out_b = out_bias[output_idx]         # (B, 1)
    co_sel = co_p1[input_idx, output_idx]                # (B,)
    s = jnp.sum(in_e * out_e, axis=1)                    # (B,)
    out_mat = s + in_b + out_b - jnp.log(co_sel)         # (B, B) via broadcasting
    w = jnp.where(co_sel <= X_MAX, (co_sel / X_MAX) ** ALPHA, 1.0)
    ref = jnp.mean(out_mat * out_mat * w)

    assert jnp.allclose(loss, ref, rtol=1e-4, atol=1e-4), (float(loss), float(ref))
    print("KERNEL_OK")
</pallas_src>

<mosaic_0001>
module attributes {stable_mosaic.version = 11 : i64} {
  func.func @_glove_tile_kernel(%arg0: i32, %arg1: i32, %arg2: memref<8x128xf32, #tpu.memory_space<vmem>>, %arg3: memref<8x128xf32, #tpu.memory_space<vmem>>, %arg4: memref<8x128xf32, #tpu.memory_space<vmem>>, %arg5: memref<1x8x128xf32, #tpu.memory_space<vmem>>) attributes {dimension_semantics = [#tpu.dimension_semantics<parallel>, #tpu.dimension_semantics<arbitrary>], iteration_bounds = array<i64: 1, 1>, scalar_prefetch = 0 : i64, scratch_operands = 0 : i64, tpu.core_type = #tpu.core_type<tc>, window_params = [{transform_indices = @transform_0, window_bounds = array<i64: 8, 128>}, {transform_indices = @transform_1, window_bounds = array<i64: 8, 128>}, {transform_indices = @transform_2, window_bounds = array<i64: 8, 128>}, {transform_indices = @transform_3, window_bounds = array<i64: 1, 8, 128>}]} {
    %c0_i32 = arith.constant 0 : i32
    %0 = arith.cmpi eq, %arg1, %c0_i32 : i32
    %1 = arith.extui %0 : i1 to i32
    %c0_i32_0 = arith.constant 0 : i32
    %2 = arith.cmpi ne, %1, %c0_i32_0 : i32
    scf.if %2 {
      %cst_27 = arith.constant 0.000000e+00 : f32
      %81 = vector.broadcast %cst_27 : f32 to vector<1x8x128xf32>
      %c0_28 = arith.constant 0 : index
      %c0_29 = arith.constant 0 : index
      %c0_30 = arith.constant 0 : index
      %82 = vector.load %arg5[%c0_28, %c0_29, %c0_30] : memref<1x8x128xf32, #tpu.memory_space<vmem>>, vector<1x8x128xf32>
      tpu.vector_store %arg5[%c0_28, %c0_29, %c0_30], %81 {strides = array<i32>} : memref<1x8x128xf32, #tpu.memory_space<vmem>>, vector<1x8x128xf32>,
    } else {
    }
    %c0 = arith.constant 0 : index
    %c0_1 = arith.constant 0 : index
    %3 = vector.load %arg2[%c0, %c0_1] : memref<8x128xf32, #tpu.memory_space<vmem>>, vector<8x128xf32>
    %c0_2 = arith.constant 0 : index
    %c0_3 = arith.constant 0 : index
    %4 = vector.load %arg3[%c0_2, %c0_3] : memref<8x128xf32, #tpu.memory_space<vmem>>, vector<8x128xf32>
    %c0_4 = arith.constant 0 : index
    %c0_5 = arith.constant 0 : index
    %5 = vector.load %arg4[%c0_4, %c0_5] : memref<8x128xf32, #tpu.memory_space<vmem>>, vector<8x128xf32>
    %6 = arith.mulf %3, %4 : vector<8x128xf32>
    %cst = arith.constant dense<0.000000e+00> : vector<8xf32>
    %7 = vector.multi_reduction <add>, %6, %cst [1] : vector<8x128xf32> to vector<8xf32>
    %8 = vector.shape_cast %7 : vector<8xf32> to vector<8x1xf32>
    %9 = vector.extract_strided_slice %5 {offsets = [0, 0], sizes = [8, 1], strides = [1, 1]} : vector<8x128xf32> to vector<8x1xf32>
    %10 = vector.extract_strided_slice %5 {offsets = [0, 1], sizes = [8, 1], strides = [1, 1]} : vector<8x128xf32> to vector<8x1xf32>
    %11 = vector.extract_strided_slice %5 {offsets = [0, 2], sizes = [8, 1], strides = [1, 1]} : vector<8x128xf32> to vector<8x1xf32>
    %12 = math.log %10 : vector<8x1xf32>
    %13 = arith.subf %8, %12 : vector<8x1xf32>
    %cst_6 = arith.constant 1.000000e+02 : f32
    %14 = vector.broadcast %cst_6 : f32 to vector<8x1xf32>
    %15 = arith.cmpf ole, %10, %14 : vector<8x1xf32>
    %cst_7 = arith.constant 4.60517025 : f32
    %16 = vector.broadcast %cst_7 : f32 to vector<8x1xf32>
    %17 = arith.subf %12, %16 : vector<8x1xf32>
    %cst_8 = arith.constant 7.500000e-01 : f32
    %18 = vector.broadcast %cst_8 : f32 to vector<8x1xf32>
    %19 = arith.mulf %18, %17 : vector<8x1xf32>
    %20 = math.exp %19 : vector<8x1xf32>
    %cst_9 = arith.constant 1.000000e+00 : f32
    %21 = vector.broadcast %cst_9 : f32 to vector<8x1xf32>
    %22 = arith.select %15, %20, %21 : vector<8x1xi1>, vector<8x1xf32>
    %23 = arith.mulf %22, %11 : vector<8x1xf32>
    %24 = vector.shape_cast %23 : vector<8x1xf32> to vector<1x8x1xf32>
    %cst_10 = arith.constant dense<0.000000e+00> : vector<1xf32>
    %25 = vector.multi_reduction <add>, %24, %cst_10 [1, 2] : vector<1x8x1xf32> to vector<1xf32>
    %26 = vector.shape_cast %25 : vector<1xf32> to vector<1x1x1xf32>
    %27 = vector.extract %26[0, 0, 0] : f32 from vector<1x1x1xf32>
    %28 = arith.mulf %23, %13 : vector<8x1xf32>
    %29 = vector.shape_cast %28 : vector<8x1xf32> to vector<1x8x1xf32>
    %cst_11 = arith.constant dense<0.000000e+00> : vector<1xf32>
    %30 = vector.multi_reduction <add>, %29, %cst_11 [1, 2] : vector<1x8x1xf32> to vector<1xf32>
    %31 = vector.shape_cast %30 : vector<1xf32> to vector<1x1x1xf32>
    %32 = vector.extract %31[0, 0, 0] : f32 from vector<1x1x1xf32>
    %33 = arith.mulf %23, %13 : vector<8x1xf32>
    %34 = arith.mulf %33, %13 : vector<8x1xf32>
    %35 = vector.shape_cast %34 : vector<8x1xf32> to vector<1x8x1xf32>
    %cst_12 = arith.constant dense<0.000000e+00> : vector<1xf32>
    %36 = vector.multi_reduction <add>, %35, %cst_12 [1, 2] : vector<1x8x1xf32> to vector<1xf32>
    %37 = vector.shape_cast %36 : vector<1xf32> to vector<1x1x1xf32>
    %38 = vector.extract %37[0, 0, 0] : f32 from vector<1x1x1xf32>
    %39 = vector.shape_cast %9 : vector<8x1xf32> to vector<1x8x1xf32>
    %cst_13 = arith.constant dense<0.000000e+00> : vector<1xf32>
    %40 = vector.multi_reduction <add>, %39, %cst_13 [1, 2] : vector<1x8x1xf32> to vector<1xf32>
    %41 = vector.shape_cast %40 : vector<1xf32> to vector<1x1x1xf32>
    %42 = vector.extract %41[0, 0, 0] : f32 from vector<1x1x1xf32>
    %43 = arith.mulf %9, %9 : vector<8x1xf32>
    %44 = vector.shape_cast %43 : vector<8x1xf32> to vector<1x8x1xf32>
    %cst_14 = arith.constant dense<0.000000e+00> : vector<1xf32>
    %45 = vector.multi_reduction <add>, %44, %cst_14 [1, 2] : vector<1x8x1xf32> to vector<1xf32>
    %46 = vector.shape_cast %45 : vector<1xf32> to vector<1x1x1xf32>
    %47 = vector.extract %46[0, 0, 0] : f32 from vector<1x1x1xf32>
    %48 = tpu.iota {dimensions = array<i32: 2>} : vector<1x8x128xi32>
    %c0_i32_15 = arith.constant 0 : i32
    %49 = vector.broadcast %c0_i32_15 : i32 to vector<1x8x128xi32>
    %50 = arith.cmpi eq, %48, %49 : vector<1x8x128xi32>
    %cst_16 = arith.constant 0.000000e+00 : f32
    %51 = vector.broadcast %27 : f32 to vector<1x8x128xf32>
    %52 = vector.broadcast %cst_16 : f32 to vector<1x8x128xf32>
    %53 = arith.select %50, %51, %52 : vector<1x8x128xi1>, vector<1x8x128xf32>
    %c1_i32 = arith.constant 1 : i32
    %54 = vector.broadcast %c1_i32 : i32 to vector<1x8x128xi32>
    %55 = arith.cmpi eq, %48, %54 : vector<1x8x128xi32>
    %cst_17 = arith.constant 0.000000e+00 : f32
    %56 = vector.broadcast %32 : f32 to vector<1x8x128xf32>
    %57 = vector.broadcast %cst_17 : f32 to vector<1x8x128xf32>
    %58 = arith.select %55, %56, %57 : vector<1x8x128xi1>, vector<1x8x128xf32>
    %59 = arith.addf %53, %58 : vector<1x8x128xf32>
    %c2_i32 = arith.constant 2 : i32
    %60 = vector.broadcast %c2_i32 : i32 to vector<1x8x128xi32>
    %61 = arith.cmpi eq, %48, %60 : vector<1x8x128xi32>
    %cst_18 = arith.constant 0.000000e+00 : f32
    %62 = vector.broadcast %38 : f32 to vector<1x8x128xf32>
    %63 = vector.broadcast %cst_18 : f32 to vector<1x8x128xf32>
    %64 = arith.select %61, %62, %63 : vector<1x8x128xi1>, vector<1x8x128xf32>
    %65 = arith.addf %59, %64 : vector<1x8x128xf32>
    %c3_i32 = arith.constant 3 : i32
    %66 = vector.broadcast %c3_i32 : i32 to vector<1x8x128xi32>
    %67 = arith.cmpi eq, %48, %66 : vector<1x8x128xi32>
    %cst_19 = arith.constant 0.000000e+00 : f32
    %68 = vector.broadcast %42 : f32 to vector<1x8x128xf32>
    %69 = vector.broadcast %cst_19 : f32 to vector<1x8x128xf32>
    %70 = arith.select %67, %68, %69 : vector<1x8x128xi1>, vector<1x8x128xf32>
    %71 = arith.addf %65, %70 : vector<1x8x128xf32>
    %c4_i32 = arith.constant 4 : i32
    %72 = vector.broadcast %c4_i32 : i32 to vector<1x8x128xi32>
    %73 = arith.cmpi eq, %48, %72 : vector<1x8x128xi32>
    %cst_20 = arith.constant 0.000000e+00 : f32
    %74 = vector.broadcast %47 : f32 to vector<1x8x128xf32>
    %75 = vector.broadcast %cst_20 : f32 to vector<1x8x128xf32>
    %76 = arith.select %73, %74, %75 : vector<1x8x128xi1>, vector<1x8x128xf32>
    %77 = arith.addf %71, %76 : vector<1x8x128xf32>
    %c0_21 = arith.constant 0 : index
    %c0_22 = arith.constant 0 : index
    %c0_23 = arith.constant 0 : index
    %78 = vector.load %arg5[%c0_21, %c0_22, %c0_23] : memref<1x8x128xf32, #tpu.memory_space<vmem>>, vector<1x8x128xf32>
    %79 = arith.addf %78, %77 : vector<1x8x128xf32>
    %c0_24 = arith.constant 0 : index
    %c0_25 = arith.constant 0 : index
    %c0_26 = arith.constant 0 : index
    %80 = vector.load %arg5[%c0_24, %c0_25, %c0_26] : memref<1x8x128xf32, #tpu.memory_space<vmem>>, vector<1x8x128xf32>
    tpu.vector_store %arg5[%c0_24, %c0_25, %c0_26], %79 {strides = array<i32>} : memref<1x8x128xf32, #tpu.memory_space<vmem>>, vector<1x8x128xf32>,
    return
  }
  func.func @transform_0(%arg0: i32, %arg1: i32) -> (i32, i32) {
    %c1_i32 = arith.constant 1 : i32
    %0 = arith.muli %arg0, %c1_i32 : i32
    %1 = arith.addi %0, %arg1 : i32
    %c0_i32 = arith.constant 0 : i32
    %c0_i32_0 = arith.constant 0 : i32
    return %1, %c0_i32 : i32, i32
  }
  func.func @transform_1(%arg0: i32, %arg1: i32) -> (i32, i32) {
    %c1_i32 = arith.constant 1 : i32
    %0 = arith.muli %arg0, %c1_i32 : i32
    %1 = arith.addi %0, %arg1 : i32
    %c0_i32 = arith.constant 0 : i32
    %c0_i32_0 = arith.constant 0 : i32
    return %1, %c0_i32 : i32, i32
  }
  func.func @transform_2(%arg0: i32, %arg1: i32) -> (i32, i32) {
    %c1_i32 = arith.constant 1 : i32
    %0 = arith.muli %arg0, %c1_i32 : i32
    %1 = arith.addi %0, %arg1 : i32
    %c0_i32 = arith.constant 0 : i32
    %c0_i32_0 = arith.constant 0 : i32
    return %1, %c0_i32 : i32, i32
  }
  func.func @transform_3(%arg0: i32, %arg1: i32) -> (i32, i32, i32) {
    %c0_i32 = arith.constant 0 : i32
    %c0_i32_0 = arith.constant 0 : i32
    %c0_i32_1 = arith.constant 0 : i32
    return %arg0, %c0_i32, %c0_i32_0 : i32, i32, i32
  }
}

</mosaic_0001>

<llo_original>
// kernel: tpu_custom_call.1
$region0: #{tpu_custom_call.1}
  #allocation0 [shape = 'u32[]', space=smem, size = 0x4, offset = 0x4, fixed_abs, tag = 'smem constant byte address 0x4 - core index']
  #allocation1 [shape = 'u32[144,128]{1,0:T(1,128)}', space=vmem, size = 0x12000, scoped, tag = 'internal scratch']
  %s0 = inlined_call_operand.hbm [shape: f32[8,128], index: 0, kind: input, shape index: {}]
  %s1 = inlined_call_operand.hbm [shape: f32[8,128], index: 1, kind: input, shape index: {}]
  %s2 = inlined_call_operand.hbm [shape: f32[8,128], index: 2, kind: input, shape index: {}]
  %s3 = inlined_call_operand.hbm [shape: f32[1,8,128], index: 3, kind: output, shape index: {}]
  %s4 = sld [smem:[#allocation0]]
  $region38: #{tpu_custom_call.1} parent=0
    _
  %s6 = ssub.s32 1, %s4
  %s7 = scalar_select 0, %s6, %s4
  $region1: #{tpu_custom_call.1} parent=0
    #allocation2 [shape = 'u8[4096]{0}', space=vmem, size = 0x1000, scoped, tag = 'input window, operand 0, single buffered']
    #allocation3 [shape = 's32[1]{0}', space=sflag, size = 0x4, scoped, tag = 'scoped memory for tpu_custom_call.1']
    #allocation4 [shape = 's32[1]{0}', space=sflag, size = 0x4, scoped, tag = 'scoped memory for tpu_custom_call.1']
    #allocation5 [shape = 'u8[4096]{0}', space=vmem, size = 0x1000, scoped, tag = 'input window, operand 1, single buffered']
    #allocation6 [shape = 's32[1]{0}', space=sflag, size = 0x4, scoped, tag = 'scoped memory for tpu_custom_call.1']
    #allocation7 [shape = 'u8[4096]{0}', space=vmem, size = 0x1000, scoped, tag = 'input window, operand 2, single buffered']
    #allocation8 [shape = 'u8[4096]{0}', space=vmem, size = 0x1000, scoped, tag = 'output window, operand 0, single buffered']
    %8 = vsyncpa [#allocation3], 0
    %9 = vsyncpa [#allocation6], 0
    %10 = vsyncpa [#allocation4], 0
    // Predicated region
    $region2: #{tpu_custom_call.1} parent=1 // pred_check
      _
    $region3: #{tpu_custom_call.1} parent=1 // pred_check_branch
      %12 = sbr.rel (0) target = $region5
    $region4: #{tpu_custom_call.1} parent=1 // pred_region
      %s13 = sadd.s32 0, 0
      %s15 = ssub.s32 128, 128
      %16 = vsyncadd [#allocation3], %s15
      %s17 = smul.addr %s13, 128
      %s18 = scalar_lea.hbm %s0, %s17
      %s20 = sshll.u32 [#allocation2], 4
      %s21 = int_to_ptr.vmem [resolvable:$true] %s20
      %23 = dma.hbm_to_vmem [thread:$0]  %s18, 128, %s21, [#allocation3]
    $region5: #{tpu_custom_call.1} parent=1 // pred_fallthru
      _
    // Predicated region
    $region6: #{tpu_custom_call.1} parent=1 // pred_check
      _
    $region7: #{tpu_custom_call.1} parent=1 // pred_check_branch
      %25 = sbr.rel (0) target = $region9
    $region8: #{tpu_custom_call.1} parent=1 // pred_region
      %s26 = sadd.s32 0, 0
      %s28 = ssub.s32 128, 128
      %29 = vsyncadd [#allocation6], %s28
      %s30 = smul.addr %s26, 128
      %s31 = scalar_lea.hbm %s1, %s30
      %s33 = sshll.u32 [#allocation5], 4
      %s34 = int_to_ptr.vmem [resolvable:$true] %s33
      %36 = dma.hbm_to_vmem [thread:$0]  %s31, 128, %s34, [#allocation6]
    $region9: #{tpu_custom_call.1} parent=1 // pred_fallthru
      _
    // Predicated region
    $region10: #{tpu_custom_call.1} parent=1 // pred_check
      _
    $region11: #{tpu_custom_call.1} parent=1 // pred_check_branch
      %38 = sbr.rel (0) target = $region13
    $region12: #{tpu_custom_call.1} parent=1 // pred_region
      %s39 = sadd.s32 0, 0
      %s41 = ssub.s32 128, 128
      %42 = vsyncadd [#allocation6], %s41
      %s43 = smul.addr %s39, 128
      %s44 = scalar_lea.hbm %s2, %s43
      %s46 = sshll.u32 [#allocation7], 4
      %s47 = int_to_ptr.vmem [resolvable:$true] %s46
      %49 = dma.hbm_to_vmem [thread:$0]  %s44, 128, %s47, [#allocation6]
    $region13: #{tpu_custom_call.1} parent=1 // pred_fallthru
      _
    // Predicated region
    $region14: #{tpu_custom_call.1} parent=1 // pred_check
      _
    $region15: #{tpu_custom_call.1} parent=1 // pred_check_branch
      %51 = sbr.rel (0) target = $region17
    $region16: #{tpu_custom_call.1} parent=1 // pred_region
      %52 = dma.done [#allocation3], 128
    $region17: #{tpu_custom_call.1} parent=1 // pred_fallthru
      _
    // Predicated region
    $region18: #{tpu_custom_call.1} parent=1 // pred_check
      _
    $region19: #{tpu_custom_call.1} parent=1 // pred_check_branch
      %54 = sbr.rel (0) target = $region21
    $region20: #{tpu_custom_call.1} parent=1 // pred_region
      %55 = dma.done [#allocation6], 128
    $region21: #{tpu_custom_call.1} parent=1 // pred_fallthru
      _
    // Predicated region
    $region22: #{tpu_custom_call.1} parent=1 // pred_check
      _
    $region23: #{tpu_custom_call.1} parent=1 // pred_check_branch
      %57 = sbr.rel (0) target = $region25
    $region24: #{tpu_custom_call.1} parent=1 // pred_region
      %58 = dma.done [#allocation6], 128
    $region25: #{tpu_custom_call.1} parent=1 // pred_fallthru
      _
    %s59 = sadd.s32 0, 0
    %s60 = sadd.s32 0, 0
    %s61 = sadd.s32 0, 0
    %p62 = scmp.eq.s32.totalorder 0, 0
    // Predicated region
    $region26: #{tpu_custom_call.1} parent=1 // pred_check
      %p63 = pneg %p62
    $region27: #{tpu_custom_call.1} parent=1 // pred_check_branch
      %65 = sbr.rel (%p63) target = $region29
    $region28: #{tpu_custom_call.1} parent=1 // pred_region
      %66 = vst [vmem:[#allocation8] sm:$0xff] 0.0
    $region29: #{tpu_custom_call.1} parent=1 // pred_fallthru
      _
    %v67 = vld [vmem:[#allocation2] sm:$0xff]
    %v68 = vld [vmem:[#allocation5] sm:$0xff]
    %v69 = vld [vmem:[#allocation7] sm:$0xff]
    %v70 = vmul.f32 %v67, %v68
    %71 = vadd.xlane.f32.xlu0 %v70
    %v72 = vpop.xlane.xlu0 %71
    %v73 = vlog2.pop %v69
    %v74 = vmul.f32 %v73, 0.6931472
    %v75 = vsub.f32 %v72, %v74
    %vm76 = vcmp.le.f32.partialorder %v69, 100.0
    %v77 = vsub.f32 %v74, 4.6051702
    %v78 = vmul.f32 %v77, 0.75
    %v79 = vmul.f32 %v78, 1.442695
    %v80 = vpow.pop %v79
    %v81 = vsel %vm76, %v80, 1.0
    %83 = vrot.lane.b32.xlu0 %v69, 127
    %v84 = vpop.permute.xlu0 %83
    %v86 = vmul.f32 %v81, %v84
    %88 = vrot.lane.b32.xlu0 %v86, 127
    %v89 = vpop.permute.xlu0 %88
    %vm91 = vcmask 7168
    %v92 = vsel %vm91, %v89, 0.0
    %93 = vadd.xlane.f32.xlu0 %v92
    %v94 = vpop.xlane.xlu0 %93
    %v95 = vrot.slane %v94, 4
    %v96 = vadd.f32 %v94, %v95
    %v97 = vrot.slane %v96, 2
    %v98 = vadd.f32 %v96, %v97
    %v99 = vrot.slane %v98, 1
    %v100 = vadd.f32 %v98, %v99
    %s101 = vtos %v100
    %v102 = vmul.f32 %v86, %v75
    %104 = vrot.lane.b32.xlu0 %v102, 127
    %v105 = vpop.permute.xlu0 %104
    %v107 = vsel %vm91, %v105, 0.0
    %108 = vadd.xlane.f32.xlu0 %v107
    %v109 = vpop.xlane.xlu0 %108
    %v110 = vrot.slane %v109, 4
    %v111 = vadd.f32 %v109, %v110
    %v112 = vrot.slane %v111, 2
    %v113 = vadd.f32 %v111, %v112
    %v114 = vrot.slane %v113, 1
    %v115 = vadd.f32 %v113, %v114
    %s116 = vtos %v115
    %v117 = vmul.f32 %v102, %v75
    %119 = vrot.lane.b32.xlu0 %v117, 127
    %v120 = vpop.permute.xlu0 %119
    %v122 = vsel %vm91, %v120, 0.0
    %123 = vadd.xlane.f32.xlu0 %v122
    %v124 = vpop.xlane.xlu0 %123
    %v125 = vrot.slane %v124, 4
    %v126 = vadd.f32 %v124, %v125
    %v127 = vrot.slane %v126, 2
    %v128 = vadd.f32 %v126, %v127
    %v129 = vrot.slane %v128, 1
    %v130 = vadd.f32 %v128, %v129
    %s131 = vtos %v130
    %v132 = vsel %vm91, %v69, 0.0
    %133 = vadd.xlane.f32.xlu0 %v132
    %v134 = vpop.xlane.xlu0 %133
    %v135 = vrot.slane %v134, 4
    %v136 = vadd.f32 %v134, %v135
    %v137 = vrot.slane %v136, 2
    %v138 = vadd.f32 %v136, %v137
    %v139 = vrot.slane %v138, 1
    %v140 = vadd.f32 %v138, %v139
    %s141 = vtos %v140
    %v142 = vmul.f32 %v69, %v69
    %v143 = vsel %vm91, %v142, 0.0
    %144 = vadd.xlane.f32.xlu0 %v143
    %v145 = vpop.xlane.xlu0 %144
    %v146 = vrot.slane %v145, 4
    %v147 = vadd.f32 %v145, %v146
    %v148 = vrot.slane %v147, 2
    %v149 = vadd.f32 %v147, %v148
    %v150 = vrot.slane %v149, 1
    %v151 = vadd.f32 %v149, %v150
    %s152 = vtos %v151
    %v153 = vlaneseq
    %v154 = vand.u32 %v153, 127
    %vm155 = vcmp.eq.s32.totalorder %v154, 0
    %v156 = vstv %s101
    %v157 = vsel %vm155, %v156, 0.0
    %vm158 = vcmp.eq.s32.totalorder %v154, 1
    %v159 = vstv %s116
    %v160 = vsel %vm158, %v159, 0.0
    %v161 = vadd.f32 %v157, %v160
    %vm162 = vcmp.eq.s32.totalorder %v154, 2
    %v163 = vstv %s131
    %v164 = vsel %vm162, %v163, 0.0
    %v165 = vadd.f32 %v161, %v164
    %vm166 = vcmp.eq.s32.totalorder %v154, 3
    %v167 = vstv %s141
    %v168 = vsel %vm166, %v167, 0.0
    %v169 = vadd.f32 %v165, %v168
    %vm170 = vcmp.eq.s32.totalorder %v154, 4
    %v171 = vstv %s152
    %v172 = vsel %vm170, %v171, 0.0
    %v173 = vadd.f32 %v169, %v172
    %v174 = vld [vmem:[#allocation8] sm:$0xff]
    %v175 = vadd.f32 %v174, %v173
    %176 = vst [vmem:[#allocation8] sm:$0xff] %v175
    // Predicated region
    $region30: #{tpu_custom_call.1} parent=1 // pred_check
      _
    $region31: #{tpu_custom_call.1} parent=1 // pred_check_branch
      %178 = sbr.rel (0) target = $region33
    $region32: #{tpu_custom_call.1} parent=1 // pred_region
      %s180 = ssub.s32 128, 128
      %181 = vsyncadd [#allocation4], %s180
      %s183 = sshll.u32 [#allocation8], 4
      %s184 = int_to_ptr.vmem [resolvable:$true] %s183
      %186 = dma.vmem_to_hbm [thread:$0]  %s184, 128, %s3, [#allocation4]
    $region33: #{tpu_custom_call.1} parent=1 // pred_fallthru
      _
    // Predicated region
    $region34: #{tpu_custom_call.1} parent=1 // pred_check
      _
    $region35: #{tpu_custom_call.1} parent=1 // pred_check_branch
      %188 = sbr.rel (0) target = $region37
    $region36: #{tpu_custom_call.1} parent=1 // pred_region
      %189 = dma.done [#allocation4], 128
    $region37: #{tpu_custom_call.1} parent=1 // pred_fallthru
      _
    %190 = vsyncpa [#allocation3], 1
    %191 = vsyncpa [#allocation6], 1
    %192 = vsyncpa [#allocation4], 1

</llo_original>
